<compile_context>
chip_gen: v5e
topology: v5e:2x2
jax: 0.10.0
libtpu: 0.0.40
codegen_flags: <defaults>
</compile_context>

<pallas_src>
import functools

import jax
import jax.numpy as jnp
import numpy as np
from jax.experimental import pallas as pl
from jax.experimental.pallas import tpu as pltpu

LANE = 128
FUSED_MAX_ELEMS = 64 * 1024      # whole-episode-resident fused path
DEFAULT_BLOCK_LANES = 64 * 1024  # streamed fallback block (multiple of 128)
_VMEM_LIMIT = 32 << 20           # safe on v5e/v6e (128 MiB) and v7x (64 MiB)


def _round_up(x, m):
    return (x + m - 1) // m * m


def _cdiv(a, b):
    return (a + b - 1) // b


# ---------------------------------------------------------------------------
# Kernels
# ---------------------------------------------------------------------------

def _im_fused_kernel(T, nu, momentum,
                     rvar_ref, r_ref, s_ref,       # inputs
                     o_ref, rvar_out_ref):         # outputs
    """Whole episode resident in VMEM: reduce + BN update + apply in one pass."""
    s = s_ref[...]                                  # (1, T) f32
    ssum = jnp.sum(s, keepdims=True)                # (1, 1)
    ssumsq = jnp.sum(s * s, keepdims=True)          # (1, 1)
    inv_n = 1.0 / float(T)
    bessel = float(T) / float(max(T - 1, 1))        # unbiased batch variance
    mean = ssum * inv_n
    var_biased = jnp.maximum(ssumsq * inv_n - mean * mean, 0.0)
    var_unbiased = var_biased * bessel
    new_rvar = (1.0 - momentum) * rvar_ref[...] + momentum * var_unbiased
    rvar_out_ref[...] = new_rvar
    # rsqrt on the EUP; fold nu in so the apply is a single FMA per element.
    scale = nu * jax.lax.rsqrt(new_rvar)            # (1, 1)
    o_ref[...] = r_ref[...] + scale * s


def _im_partial_reduce_kernel(T, BLK, s_ref, psum_ref, psumsq_ref):
    """Fully parallel per-block partial sum / sum-of-squares (tail masked)."""
    b = pl.program_id(0)
    s = s_ref[...]                                          # (1, BLK)
    idx = jax.lax.broadcasted_iota(jnp.int32, s.shape, 1) + b * BLK
    s = jnp.where(idx < T, s, 0.0)                          # mask ragged tail
    bsum = jnp.sum(s, keepdims=True)                        # (1, 1)
    bsumsq = jnp.sum(s * s, keepdims=True)                  # (1, 1)
    psum_ref[...] = jnp.broadcast_to(bsum, psum_ref.shape)      # (8, 128) splat
    psumsq_ref[...] = jnp.broadcast_to(bsumsq, psumsq_ref.shape)


def _im_apply_kernel(scale_ref, r_ref, s_ref, o_ref):
    """out = r + scale * s  (scale is an SMEM scalar; fully parallel blocks)."""
    o_ref[...] = r_ref[...] + scale_ref[0, 0] * s_ref[...]


# ---------------------------------------------------------------------------
# pallas_call helpers
# ---------------------------------------------------------------------------

def _apply_call(scale, r2, s2, BLK, nb):
    T = r2.shape[1]
    return pl.pallas_call(
        _im_apply_kernel,
        grid=(nb,),
        in_specs=[
            pl.BlockSpec(memory_space=pltpu.MemorySpace.SMEM),   # scale (1,1)
            pl.BlockSpec((1, BLK), lambda b: (0, b)),            # reward
            pl.BlockSpec((1, BLK), lambda b: (0, b)),            # surprisal
        ],
        out_specs=pl.BlockSpec((1, BLK), lambda b: (0, b)),
        out_shape=jax.ShapeDtypeStruct((1, T), jnp.float32),
        input_output_aliases={1: 0},                             # in-place
        compiler_params=pltpu.CompilerParams(
            dimension_semantics=("parallel",),
            vmem_limit_bytes=_VMEM_LIMIT),
    )(scale, r2, s2)


def _pick_block(T, block_lanes):
    if T <= block_lanes:
        return T, 1                    # single block == full dim (always legal)
    return block_lanes, _cdiv(T, block_lanes)


@functools.partial(
    jax.jit,
    static_argnames=("nu", "momentum", "im_scale", "fused_max", "block_lanes"))
def _add_im_reward_impl(reward, surprisal, running_var, *,
                        nu, momentum, im_scale, fused_max, block_lanes):
    T = reward.shape[0]
    # Bitcast views only -- no padding, no copies, no output slice.
    r2 = reward.astype(jnp.float32).reshape(1, T)
    s2 = surprisal.astype(jnp.float32).reshape(1, T)

    if im_scale and T <= fused_max:
        # --- common case: one fused, fully resident kernel -----------------
        rvar = jnp.asarray(running_var, jnp.float32).reshape(1, 1)
        kernel = functools.partial(_im_fused_kernel,
                                   T, float(nu), float(momentum))
        out_r, out_rvar = pl.pallas_call(
            kernel,
            grid=(1,),
            in_specs=[
                pl.BlockSpec((1, 1), lambda i: (0, 0)),   # running_var
                pl.BlockSpec((1, T), lambda i: (0, 0)),   # reward
                pl.BlockSpec((1, T), lambda i: (0, 0)),   # surprisal
            ],
            out_specs=(
                pl.BlockSpec((1, T), lambda i: (0, 0)),   # new reward
                pl.BlockSpec((1, 1), lambda i: (0, 0)),   # new running_var
            ),
            out_shape=(
                jax.ShapeDtypeStruct((1, T), jnp.float32),
                jax.ShapeDtypeStruct((1, 1), jnp.float32),
            ),
            input_output_aliases={1: 0},                  # in-place relabel
            compiler_params=pltpu.CompilerParams(
                dimension_semantics=("arbitrary",),
                vmem_limit_bytes=_VMEM_LIMIT),
        )(rvar, r2, s2)
        new_rvar = out_rvar.reshape(())

    elif im_scale:
        # --- long episodes: parallel reduce -> tiny combine -> parallel apply
        BLK, nb = _pick_block(T, block_lanes)
        psum_t, psumsq_t = pl.pallas_call(
            functools.partial(_im_partial_reduce_kernel, T, BLK),
            grid=(nb,),
            in_specs=[pl.BlockSpec((1, BLK), lambda b: (0, b))],
            out_specs=(
                pl.BlockSpec((8, LANE), lambda b: (b, 0)),
                pl.BlockSpec((8, LANE), lambda b: (b, 0)),
            ),
            out_shape=(
                jax.ShapeDtypeStruct((nb * 8, LANE), jnp.float32),
                jax.ShapeDtypeStruct((nb * 8, LANE), jnp.float32),
            ),
            compiler_params=pltpu.CompilerParams(
                dimension_semantics=("parallel",),
                vmem_limit_bytes=_VMEM_LIMIT),
        )(s2)
        ssum = jnp.sum(psum_t.reshape(nb, 8, LANE)[:, 0, 0])
        ssumsq = jnp.sum(psumsq_t.reshape(nb, 8, LANE)[:, 0, 0])
        inv_n = 1.0 / float(T)
        bessel = float(T) / float(max(T - 1, 1))
        mean = ssum * inv_n
        var_biased = jnp.maximum(ssumsq * inv_n - mean * mean, 0.0)
        var_unbiased = var_biased * bessel
        rvar0 = jnp.asarray(running_var, jnp.float32).reshape(())
        new_rvar = (1.0 - float(momentum)) * rvar0 + float(momentum) * var_unbiased
        scale = (float(nu) * jax.lax.rsqrt(new_rvar)).reshape(1, 1)
        out_r = _apply_call(scale, r2, s2, BLK, nb)

    else:
        # --- no BN scaling: out = r + nu * s, fully parallel ----------------
        BLK, nb = _pick_block(T, block_lanes)
        scale = jnp.full((1, 1), float(nu), jnp.float32)
        out_r = _apply_call(scale, r2, s2, BLK, nb)
        new_rvar = jnp.asarray(running_var, jnp.float32).reshape(())

    return out_r.reshape(T), new_rvar


def add_im_reward_pallas(reward, surprisal, running_var, *,
                         nu=0.01, momentum=0.1, im_scale=True,
                         fused_max=FUSED_MAX_ELEMS,
                         block_lanes=DEFAULT_BLOCK_LANES):
    """Relabel one episode's rewards with intrinsic motivation (Pallas)."""
    block_lanes = max(LANE, _round_up(int(block_lanes), LANE))
    return _add_im_reward_impl(reward, surprisal, running_var,
                               nu=float(nu), momentum=float(momentum),
                               im_scale=bool(im_scale),
                               fused_max=int(fused_max),
                               block_lanes=int(block_lanes))


# ---------------------------------------------------------------------------
# BaseLearner port (concrete pieces only)
# ---------------------------------------------------------------------------

class BaseLearnerPallas:
    """JAX/Pallas port of BaseLearner's concrete numeric pieces."""
    AGENT_TYPE = 'Base'

    def __init__(self, gamma=0.99, env_params=None, im_params=None,
                 bootstrap_from_early_terminal=True):
        self.gamma = float(gamma)
        assert 0 < self.gamma <= 1.0
        self.env_params = env_params if env_params is not None else {}
        self.im_params = im_params
        self.bootstrap_from_early_terminal = bool(bootstrap_from_early_terminal)
        # nn.Parameter(torch.zeros(1)), requires_grad = False
        self.train_steps = jnp.zeros((1,), dtype=jnp.float32)
        if self.im_params is None:
            self.im_nu = None
            self.im_lambda = None
            self.im_scale = None
        else:
            self.im_nu = self.im_params.get('nu', 0.01)
            self.im_lambda = self.im_params.get('lambda', 0.05)
            self.im_scale = self.im_params.get('scale', False)
        # BatchNorm1d(1) running stats (only running_var is used by the module)
        self._im_bn_running_var = jnp.ones((), dtype=jnp.float32)
        self._im_bn_momentum = 0.1
        self._ep_summary = []

    def normalize_batch(self, batch_dict):
        return batch_dict

    def _add_im_reward(self, rewards, surprisals):
        """Pallas hot path: reward += nu * (optionally BN-scaled) surprisal."""
        if self.im_params is None:
            return rewards
        new_rewards, new_rvar = add_im_reward_pallas(
            rewards, surprisals, self._im_bn_running_var,
            nu=self.im_nu, momentum=self._im_bn_momentum,
            im_scale=self.im_scale)
        self._im_bn_running_var = new_rvar
        return new_rewards

    # TODO(synk): forward(), get_values(), _make_agent_modules(), soft_update(),
    # agent/env plumbing and checkpoint I/O are abstract / torch-side in the
    # original module -- nothing to lower.


# ---------------------------------------------------------------------------
# Reference + test
# ---------------------------------------------------------------------------

def _reference_add_im_reward(reward, surprisal, running_var, nu, momentum, im_scale):
    reward = np.asarray(reward, np.float64)
    surprisal = np.asarray(surprisal, np.float64)
    if im_scale:
        var_unbiased = surprisal.var(ddof=1)
        new_rvar = (1.0 - momentum) * float(running_var) + momentum * var_unbiased
        scaled = surprisal / np.sqrt(new_rvar)
    else:
        scaled = surprisal
        new_rvar = float(running_var)
    return reward + nu * scaled, new_rvar


if __name__ == "__main__":
    key = jax.random.PRNGKey(0)
    k1, k2, k3, k4 = jax.random.split(key, 4)

    # --- small episode: fused whole-episode-resident path ------------------
    T = 8
    rewards = jax.random.normal(k1, (T,), dtype=jnp.float32)
    surprisals = jax.random.uniform(k2, (T,), dtype=jnp.float32) * 2.0

    learner = BaseLearnerPallas(
        gamma=0.99,
        im_params={'nu': 0.01, 'lambda': 0.05, 'scale': True, 'type': 'dummy'},
    )
    new_rewards = learner._add_im_reward(rewards, surprisals)
    jax.block_until_ready(new_rewards)
    jax.block_until_ready(learner._im_bn_running_var)

    ref_rewards, ref_rvar = _reference_add_im_reward(
        rewards, surprisals, 1.0, 0.01, 0.1, True)
    np.testing.assert_allclose(np.asarray(new_rewards), ref_rewards,
                               rtol=1e-5, atol=1e-5)
    np.testing.assert_allclose(float(learner._im_bn_running_var), ref_rvar,
                               rtol=1e-5, atol=1e-5)

    # --- longer episode, force the parallel reduce + apply fallback --------
    T2 = 2000
    r_long = jax.random.normal(k3, (T2,), dtype=jnp.float32)
    s_long = jax.random.uniform(k4, (T2,), dtype=jnp.float32) * 2.0
    out_long, rvar_long = add_im_reward_pallas(
        r_long, s_long, jnp.float32(1.0),
        nu=0.01, momentum=0.1, im_scale=True,
        fused_max=0, block_lanes=512)          # force blocked path + ragged tail
    jax.block_until_ready(out_long)
    ref_long, ref_rvar_long = _reference_add_im_reward(
        r_long, s_long, 1.0, 0.01, 0.1, True)
    np.testing.assert_allclose(np.asarray(out_long), ref_long,
                               rtol=1e-5, atol=1e-5)
    np.testing.assert_allclose(float(rvar_long), ref_rvar_long,
                               rtol=1e-4, atol=1e-5)

    # --- unscaled path (im_scale=False), multi-block parallel apply --------
    out_plain, _ = add_im_reward_pallas(
        r_long, s_long, jnp.float32(1.0),
        nu=0.01, momentum=0.1, im_scale=False, block_lanes=256)
    jax.block_until_ready(out_plain)
    ref_plain, _ = _reference_add_im_reward(r_long, s_long, 1.0, 0.01, 0.1, False)
    np.testing.assert_allclose(np.asarray(out_plain), ref_plain,
                               rtol=1e-5, atol=1e-5)

    # --- unscaled path via the learner class (single block) ----------------
    learner2 = BaseLearnerPallas(im_params={'nu': 0.01, 'scale': False})
    out2 = learner2._add_im_reward(rewards, surprisals)
    jax.block_until_ready(out2)
    ref2, _ = _reference_add_im_reward(rewards, surprisals, 1.0, 0.01, 0.1, False)
    np.testing.assert_allclose(np.asarray(out2), ref2, rtol=1e-5, atol=1e-5)

    print("KERNEL_OK")
</pallas_src>

<mosaic_0001>
module attributes {stable_mosaic.version = 11 : i64} {
  func.func @_im_fused_kernel(%arg0: i32, %arg1: memref<1x1xf32, #tpu.memory_space<vmem>>, %arg2: memref<1x8xf32, #tpu.memory_space<vmem>>, %arg3: memref<1x8xf32, #tpu.memory_space<vmem>>, %arg4: memref<1x8xf32, #tpu.memory_space<vmem>>, %arg5: memref<1x1xf32, #tpu.memory_space<vmem>>) attributes {dimension_semantics = [#tpu.dimension_semantics<arbitrary>], iteration_bounds = array<i64: 1>, scalar_prefetch = 0 : i64, scratch_operands = 0 : i64, tpu.core_type = #tpu.core_type<tc>, window_params = [{pipeline_mode = #tpu.pipeline_mode<synchronous>, transform_indices = @transform_0, window_bounds = array<i64: 1, 1>}, {pipeline_mode = #tpu.pipeline_mode<synchronous>, transform_indices = @transform_1, window_bounds = array<i64: 1, 8>}, {pipeline_mode = #tpu.pipeline_mode<synchronous>, transform_indices = @transform_2, window_bounds = array<i64: 1, 8>}, {pipeline_mode = #tpu.pipeline_mode<synchronous>, transform_indices = @transform_3, window_bounds = array<i64: 1, 8>}, {pipeline_mode = #tpu.pipeline_mode<synchronous>, transform_indices = @transform_4, window_bounds = array<i64: 1, 1>}]} {
    %c0 = arith.constant 0 : index
    %c0_0 = arith.constant 0 : index
    %0 = vector.load %arg3[%c0, %c0_0] : memref<1x8xf32, #tpu.memory_space<vmem>>, vector<1x8xf32>
    %1 = vector.shape_cast %0 : vector<1x8xf32> to vector<1x1x8xf32>
    %cst = arith.constant dense<0.000000e+00> : vector<1xf32>
    %2 = vector.multi_reduction <add>, %1, %cst [1, 2] : vector<1x1x8xf32> to vector<1xf32>
    %3 = vector.shape_cast %2 : vector<1xf32> to vector<1x1x1xf32>
    %4 = vector.extract %3[0, 0, 0] : f32 from vector<1x1x1xf32>
    %5 = vector.broadcast %4 : f32 to vector<1x1xf32>
    %6 = arith.mulf %0, %0 : vector<1x8xf32>
    %7 = vector.shape_cast %6 : vector<1x8xf32> to vector<1x1x8xf32>
    %cst_1 = arith.constant dense<0.000000e+00> : vector<1xf32>
    %8 = vector.multi_reduction <add>, %7, %cst_1 [1, 2] : vector<1x1x8xf32> to vector<1xf32>
    %9 = vector.shape_cast %8 : vector<1xf32> to vector<1x1x1xf32>
    %10 = vector.extract %9[0, 0, 0] : f32 from vector<1x1x1xf32>
    %11 = vector.broadcast %10 : f32 to vector<1x1xf32>
    %cst_2 = arith.constant 1.250000e-01 : f32
    %12 = vector.broadcast %cst_2 : f32 to vector<1x1xf32>
    %13 = arith.mulf %5, %12 : vector<1x1xf32>
    %cst_3 = arith.constant 1.250000e-01 : f32
    %14 = vector.broadcast %cst_3 : f32 to vector<1x1xf32>
    %15 = arith.mulf %11, %14 : vector<1x1xf32>
    %16 = arith.mulf %13, %13 : vector<1x1xf32>
    %17 = arith.subf %15, %16 : vector<1x1xf32>
    %cst_4 = arith.constant 0.000000e+00 : f32
    %18 = vector.broadcast %cst_4 : f32 to vector<1x1xf32>
    %19 = arith.maximumf %17, %18 : vector<1x1xf32>
    %cst_5 = arith.constant 1.14285719 : f32
    %20 = vector.broadcast %cst_5 : f32 to vector<1x1xf32>
    %21 = arith.mulf %19, %20 : vector<1x1xf32>
    %c0_6 = arith.constant 0 : index
    %c0_7 = arith.constant 0 : index
    %22 = vector.load %arg1[%c0_6, %c0_7] : memref<1x1xf32, #tpu.memory_space<vmem>>, vector<1x1xf32>
    %cst_8 = arith.constant 0.899999976 : f32
    %23 = vector.broadcast %cst_8 : f32 to vector<1x1xf32>
    %24 = arith.mulf %23, %22 : vector<1x1xf32>
    %cst_9 = arith.constant 1.000000e-01 : f32
    %25 = vector.broadcast %cst_9 : f32 to vector<1x1xf32>
    %26 = arith.mulf %25, %21 : vector<1x1xf32>
    %27 = arith.addf %24, %26 : vector<1x1xf32>
    %c0_10 = arith.constant 0 : index
    %c0_11 = arith.constant 0 : index
    %28 = vector.load %arg5[%c0_10, %c0_11] : memref<1x1xf32, #tpu.memory_space<vmem>>, vector<1x1xf32>
    tpu.vector_store %arg5[%c0_10, %c0_11], %27 {strides = array<i32>} : memref<1x1xf32, #tpu.memory_space<vmem>>, vector<1x1xf32>,
    %29 = math.rsqrt %27 : vector<1x1xf32>
    %cst_12 = arith.constant 0.00999999977 : f32
    %30 = vector.broadcast %cst_12 : f32 to vector<1x1xf32>
    %31 = arith.mulf %30, %29 : vector<1x1xf32>
    %c0_13 = arith.constant 0 : index
    %c0_14 = arith.constant 0 : index
    %32 = vector.load %arg2[%c0_13, %c0_14] : memref<1x8xf32, #tpu.memory_space<vmem>>, vector<1x8xf32>
    %33 = vector.broadcast %31 : vector<1x1xf32> to vector<1x8xf32>
    %34 = arith.mulf %33, %0 : vector<1x8xf32>
    %35 = arith.addf %32, %34 : vector<1x8xf32>
    %c0_15 = arith.constant 0 : index
    %c0_16 = arith.constant 0 : index
    %36 = vector.load %arg4[%c0_15, %c0_16] : memref<1x8xf32, #tpu.memory_space<vmem>>, vector<1x8xf32>
    tpu.vector_store %arg4[%c0_15, %c0_16], %35 {strides = array<i32>} : memref<1x8xf32, #tpu.memory_space<vmem>>, vector<1x8xf32>,
    return
  }
  func.func @transform_0(%arg0: i32) -> (i32, i32) {
    %c0_i32 = arith.constant 0 : i32
    %c0_i32_0 = arith.constant 0 : i32
    %c0_i32_1 = arith.constant 0 : i32
    return %c0_i32, %c0_i32_0 : i32, i32
  }
  func.func @transform_1(%arg0: i32) -> (i32, i32) {
    %c0_i32 = arith.constant 0 : i32
    %c0_i32_0 = arith.constant 0 : i32
    %c0_i32_1 = arith.constant 0 : i32
    return %c0_i32, %c0_i32_0 : i32, i32
  }
  func.func @transform_2(%arg0: i32) -> (i32, i32) {
    %c0_i32 = arith.constant 0 : i32
    %c0_i32_0 = arith.constant 0 : i32
    %c0_i32_1 = arith.constant 0 : i32
    return %c0_i32, %c0_i32_0 : i32, i32
  }
  func.func @transform_3(%arg0: i32) -> (i32, i32) {
    %c0_i32 = arith.constant 0 : i32
    %c0_i32_0 = arith.constant 0 : i32
    %c0_i32_1 = arith.constant 0 : i32
    return %c0_i32, %c0_i32_0 : i32, i32
  }
  func.func @transform_4(%arg0: i32) -> (i32, i32) {
    %c0_i32 = arith.constant 0 : i32
    %c0_i32_0 = arith.constant 0 : i32
    %c0_i32_1 = arith.constant 0 : i32
    return %c0_i32, %c0_i32_0 : i32, i32
  }
}

</mosaic_0001>

<llo_original>
// kernel: _add_im_reward_impl.1
$region0: #{_add_im_reward_impl.1}
  #allocation0 [shape = 'u32[]', space=smem, size = 0x4, offset = 0x4, fixed_abs, tag = 'smem constant byte address 0x4 - core index']
  #allocation1 [shape = 'u32[72,128]{1,0:T(1,128)}', space=vmem, size = 0x9000, scoped, tag = 'internal scratch']
  #allocation2 [shape = 'f32[1,1]{1,0:T(1,128)S(1)}', space=vmem, size = 0x200, scoped, tag = 'scoped memory for _add_im_reward_impl.1']
  %s0 = inlined_call_operand.<no memory space> [shape: f32[1,1], index: 0, kind: input, shape index: {}]
  %s1 = inlined_call_operand.vmem [shape: f32[1,8], index: 1, kind: input, shape index: {}, may-alias: {1,3}]
  %s2 = inlined_call_operand.vmem [shape: f32[1,8], index: 2, kind: input, shape index: {}]
  %s3 = inlined_call_operand.vmem [shape: f32[1,8], index: 3, kind: output, shape index: {0}, may-alias: {1,3}]
  %s4 = inlined_call_operand.hbm [shape: f32[1,1], index: 4, kind: output, shape index: {1}]
  %5 = xla_tuple %s3, %s4
  %s6 = sld [smem:[#allocation0]]
  $region30: #{_add_im_reward_impl.1} parent=0
    _
  %s8 = ssub.s32 1, %s6
  %s9 = scalar_select 0, %s8, %s6
  %v10 = vstv %s0
  %11 = vst [vmem:[#allocation2] sm:$0x1] %v10
  $region1: #{_add_im_reward_impl.1} parent=0
    #allocation3 [shape = 'u8[512]{0}', space=vmem, size = 0x400, scoped, tag = 'output window, operand 1, single buffered']
    #allocation4 [shape = 's32[1]{0}', space=sflag, size = 0x4, scoped, tag = 'scoped memory for _add_im_reward_impl.1']
    %12 = vsyncpa [#allocation4], 0
    // Predicated region
    $region2: #{_add_im_reward_impl.1} parent=1 // pred_check
      _
    $region3: #{_add_im_reward_impl.1} parent=1 // pred_check_branch
      %14 = sbr.rel (0) target = $region5
    $region4: #{_add_im_reward_impl.1} parent=1 // pred_region
      _
    $region5: #{_add_im_reward_impl.1} parent=1 // pred_fallthru
      _
    // Predicated region
    $region6: #{_add_im_reward_impl.1} parent=1 // pred_check
      _
    $region7: #{_add_im_reward_impl.1} parent=1 // pred_check_branch
      %16 = sbr.rel (0) target = $region9
    $region8: #{_add_im_reward_impl.1} parent=1 // pred_region
      _
    $region9: #{_add_im_reward_impl.1} parent=1 // pred_fallthru
      _
    // Predicated region
    $region10: #{_add_im_reward_impl.1} parent=1 // pred_check
      _
    $region11: #{_add_im_reward_impl.1} parent=1 // pred_check_branch
      %18 = sbr.rel (0) target = $region13
    $region12: #{_add_im_reward_impl.1} parent=1 // pred_region
      _
    $region13: #{_add_im_reward_impl.1} parent=1 // pred_fallthru
      _
    %v19 = vld [vmem:[%s2] sm:$0x1]
    %vm20 = vcmask 57344
    %v21 = vsel %vm20, %v19, 0.0
    %22 = vadd.xlane.f32.xlu0 %v21
    %v23 = vpop.xlane.xlu0 %22
    %v24 = vrot.slane %v23, 4
    %v25 = vadd.f32 %v23, %v24
    %v26 = vrot.slane %v25, 2
    %v27 = vadd.f32 %v25, %v26
    %v28 = vrot.slane %v27, 1
    %v29 = vadd.f32 %v27, %v28
    %s30 = vtos %v29
    %v31 = vstv %s30
    %v32 = vmul.f32 %v19, %v19
    %v33 = vsel %vm20, %v32, 0.0
    %34 = vadd.xlane.f32.xlu0 %v33
    %v35 = vpop.xlane.xlu0 %34
    %v36 = vrot.slane %v35, 4
    %v37 = vadd.f32 %v35, %v36
    %v38 = vrot.slane %v37, 2
    %v39 = vadd.f32 %v37, %v38
    %v40 = vrot.slane %v39, 1
    %v41 = vadd.f32 %v39, %v40
    %s42 = vtos %v41
    %v43 = vstv %s42
    %v44 = vmul.f32 %v31, 0.125
    %v45 = vmul.f32 %v43, 0.125
    %v46 = vmul.f32 %v44, %v44
    %v47 = vsub.f32 %v45, %v46
    %v48 = vmax.f32 %v47, 0.0
    %v49 = vmul.f32 %v48, 1.1428572
    %v50 = vld [vmem:[#allocation2] sm:$0x1]
    %v51 = vmul.f32 %v50, 0.9
    %v52 = vmul.f32 %v49, 0.1
    %v53 = vadd.f32 %v51, %v52
    %vm54 = vcmask 0
    %55 = vst.msk [vmem:[#allocation3] sm:$0x1] %vm54, %v53
    %v56 = vrsqrt.pop %v53
    %v57 = vmul.f32 %v56, %v53
    %v58 = vmul.f32 %v57, %v56
    %v59 = vmul.f32 0.5, %v58
    %v60 = vsub.f32 1.5, %v59
    %v61 = vmul.f32 %v56, %v60
    %vm62 = vweird.f32 %v53
    %vm63 = vweird.f32 %v56
    %vm64 = vmor %vm62, %vm63
    %v65 = vsel %vm64, %v56, %v61
    %v66 = vmul.f32 %v65, 0.01
    %v67 = vld [vmem:[%s1] sm:$0x1]
    %69 = vset.pattern.permute.xlu0 0
    %70 = vperm.xlu0 %69, %v66
    %v71 = vpop.permute.xlu0 %70
    %v73 = vperm.slane %v71, 0
    %v74 = vmul.f32 %v73, %v19
    %v75 = vadd.f32 %v67, %v74
    %76 = vst.msk [vmem:[%s3] sm:$0x1] %vm20, %v75
    // Predicated region
    $region14: #{_add_im_reward_impl.1} parent=1 // pred_check
      _
    $region15: #{_add_im_reward_impl.1} parent=1 // pred_check_branch
      %78 = sbr.rel (0) target = $region17
    $region16: #{_add_im_reward_impl.1} parent=1 // pred_region
      _
    $region17: #{_add_im_reward_impl.1} parent=1 // pred_fallthru
      _
    // Predicated region
    $region18: #{_add_im_reward_impl.1} parent=1 // pred_check
      _
    $region19: #{_add_im_reward_impl.1} parent=1 // pred_check_branch
      %80 = sbr.rel (0) target = $region21
    $region20: #{_add_im_reward_impl.1} parent=1 // pred_region
      %82 = vsyncadd [#allocation4], 0
      %s84 = sshll.u32 [#allocation3], 4
      %s85 = int_to_ptr.vmem [resolvable:$true] %s84
      %s86 = sshll.u32 %s4, 4
      %s87 = int_to_ptr.hbm [resolvable:$true] %s86
      %89 = dma.vmem_to_hbm [thread:$0]  %s85, 16, %s87, [#allocation4]
    $region21: #{_add_im_reward_impl.1} parent=1 // pred_fallthru
      _
    // Predicated region
    $region22: #{_add_im_reward_impl.1} parent=1 // pred_check
      _
    $region23: #{_add_im_reward_impl.1} parent=1 // pred_check_branch
      %91 = sbr.rel (0) target = $region25
    $region24: #{_add_im_reward_impl.1} parent=1 // pred_region
      _
    $region25: #{_add_im_reward_impl.1} parent=1 // pred_fallthru
      _
    // Predicated region
    $region26: #{_add_im_reward_impl.1} parent=1 // pred_check
      _
    $region27: #{_add_im_reward_impl.1} parent=1 // pred_check_branch
      %93 = sbr.rel (0) target = $region29
    $region28: #{_add_im_reward_impl.1} parent=1 // pred_region
      %95 = dma.done [#allocation4], 16
    $region29: #{_add_im_reward_impl.1} parent=1 // pred_fallthru
      _
    %96 = vsyncpa [#allocation4], 1

</llo_original>
